<compile_context>
chip_gen: v7x
topology: tpu7x:2x2x1
jax: 0.10.0
libtpu: 0.0.40
codegen_flags: <defaults>
</compile_context>

<pallas_src>
import functools

import jax
import jax.numpy as jnp
from jax import lax
from jax.experimental import pallas as pl
from jax.experimental.pallas import tpu as pltpu


def _round_up(x: int, m: int) -> int:
    return ((x + m - 1) // m) * m


def _decoder_kernel(x_ref, w_ref, b_ref, o_ref, *, compute_dtype):
    # x_ref: (D, Tt)   one batch element, one time tile (channels-major, as stored)
    # w_ref: (D, Vp)   projection weight (already compute_dtype)
    # b_ref: (1, Vp)   f32 bias; padded vocab lanes hold -1e30
    # o_ref: (Tt, Vp)  f32 log-probs
    x = x_ref[...].astype(compute_dtype)
    w = w_ref[...]

    # Contract over D (axis 0 of both operands): logits = x^T @ w -> (Tt, Vp).
    # This is the fused transpose: the MXU takes the transposed LHS natively.
    logits = lax.dot_general(
        x, w,
        dimension_numbers=(((0,), (0,)), ((), ())),
        preferred_element_type=jnp.float32,
    )
    logits = logits + b_ref[...]

    # Numerically-stable log-softmax over the (lane-dense, padded) vocab axis.
    # Padded lanes have logit ~ -1e30: they never win the max and exp() -> 0.
    m = jnp.max(logits, axis=-1, keepdims=True)
    shifted = logits - m
    lse = jnp.log(jnp.sum(jnp.exp(shifted), axis=-1, keepdims=True))
    o_ref[...] = (shifted - lse).astype(o_ref.dtype)


@functools.partial(jax.jit, static_argnames=("t_tile", "compute_dtype"))
def conv_asr_decoder(encoder_output, weight, bias, *, t_tile=512,
                     compute_dtype=jnp.bfloat16):
    """ConvASRDecoder forward.

    encoder_output: (B, D, T) float32
    weight:         (V, D)    Conv1d weight with the k=1 axis squeezed
    bias:           (V,)
    Returns log-probs (B, T, V) float32.
    """
    B, D, T = encoder_output.shape
    V = weight.shape[0]
    Vp = _round_up(V, 128)                       # lane-dense output last dim

    # Time tiling: one big tile if the sequence is short, otherwise a
    # 128-aligned tile (BlockSpec last-dim constraint for the input blocks)
    # with T padded up to a multiple of the tile.
    if T <= t_tile:
        t_blk = max(_round_up(T, 8), 8)
        Tp = t_blk
    else:
        t_blk = _round_up(t_tile, 128)
        Tp = _round_up(T, t_blk)

    x = encoder_output
    if Tp != T:
        # Padded time steps produce finite garbage rows that are sliced off.
        x = jnp.pad(x, ((0, 0), (0, 0), (0, Tp - T)))

    # Weight as (D, V) for the contraction; pad vocab lanes with zero weight
    # and a huge negative bias so padded logits vanish under softmax.
    w = jnp.transpose(weight, (1, 0)).astype(compute_dtype)   # (D, V)
    b = bias.astype(jnp.float32)                              # (V,)
    if Vp != V:
        w = jnp.pad(w, ((0, 0), (0, Vp - V)))
        b = jnp.pad(b, (0, Vp - V), constant_values=-1e30)
    b = b.reshape(1, Vp)

    grid = (B, Tp // t_blk)
    kernel = functools.partial(_decoder_kernel, compute_dtype=compute_dtype)

    out = pl.pallas_call(
        kernel,
        out_shape=jax.ShapeDtypeStruct((B, Tp, Vp), jnp.float32),
        grid_spec=pltpu.PrefetchScalarGridSpec(
            num_scalar_prefetch=0,
            grid=grid,
            in_specs=[
                # Activations consumed in their native (B, D, T) layout:
                # one batch element, all channels, one time tile.
                pl.BlockSpec((None, D, t_blk), lambda bi, ti: (bi, 0, ti)),
                # Weight / bias: constant block index -> stays resident in VMEM.
                pl.BlockSpec((D, Vp), lambda bi, ti: (0, 0)),
                pl.BlockSpec((1, Vp), lambda bi, ti: (0, 0)),
            ],
            out_specs=pl.BlockSpec((None, t_blk, Vp), lambda bi, ti: (bi, 0, ti)),
        ),
        compiler_params=pltpu.CompilerParams(
            # Both grid axes are independent; v7x can shard them across its
            # two TensorCores.
            dimension_semantics=("parallel", "parallel"),
            # Raise the scoped VMEM cap so the large time tiles fit
            # (stays within v7x's 64 MiB physical VMEM at default tile sizes).
            vmem_limit_bytes=64 * 1024 * 1024,
        ),
    )(x, w, b)

    # Drop time / vocab padding.
    return out[:, :T, :V]


if __name__ == "__main__":
    # Small shapes consistent with the module's forward: (B, D, T)
    B, D, T = 2, 32, 16
    vocab_size = 10                      # len(vocabulary)
    V = vocab_size + 1                   # + blank

    key = jax.random.PRNGKey(0)
    kx, kw, kb = jax.random.split(key, 3)

    encoder_output = jax.random.normal(kx, (B, D, T), dtype=jnp.float32)
    # Conv1d(feat_in, num_classes, kernel_size=1) weight is (V, D, 1); keep (V, D).
    weight = jax.random.normal(kw, (V, D), dtype=jnp.float32) * (D ** -0.5)
    bias = jax.random.normal(kb, (V,), dtype=jnp.float32) * 0.01

    out = conv_asr_decoder(encoder_output, weight, bias)
    out = jax.block_until_ready(out)

    # Pure-JAX f32 reference of the forward semantics (kernel uses bf16
    # operands with f32 accumulation, so compare with a loose tolerance).
    ref_logits = jnp.einsum("bdt,vd->btv", encoder_output, weight) + bias
    ref = jax.nn.log_softmax(ref_logits, axis=-1)

    assert out.shape == (B, T, V), out.shape
    max_err = float(jnp.max(jnp.abs(out - ref)))
    assert max_err < 5e-2, f"mismatch vs reference, max abs err = {max_err}"
    # log-probs must exponentiate to a proper distribution over the REAL vocab
    assert jnp.allclose(jnp.sum(jnp.exp(out), axis=-1), 1.0, atol=1e-3)

    print("KERNEL_OK")
</pallas_src>

<mosaic_0001>
module attributes {stable_mosaic.version = 11 : i64} {
  func.func @_decoder_kernel(%arg0: i32, %arg1: i32, %arg2: memref<1x32x16xf32, #tpu.memory_space<vmem>>, %arg3: memref<32x128xbf16, #tpu.memory_space<vmem>>, %arg4: memref<1x128xf32, #tpu.memory_space<vmem>>, %arg5: memref<1x16x128xf32, #tpu.memory_space<vmem>>) attributes {dimension_semantics = [#tpu.dimension_semantics<parallel>, #tpu.dimension_semantics<parallel>], iteration_bounds = array<i64: 2, 1>, scalar_prefetch = 0 : i64, scratch_operands = 0 : i64, tpu.core_type = #tpu.core_type<tc>, window_params = [{transform_indices = @transform_0, window_bounds = array<i64: 1, 32, 16>}, {pipeline_mode = #tpu.pipeline_mode<synchronous>, transform_indices = @transform_1, window_bounds = array<i64: 32, 128>}, {pipeline_mode = #tpu.pipeline_mode<synchronous>, transform_indices = @transform_2, window_bounds = array<i64: 1, 128>}, {transform_indices = @transform_3, window_bounds = array<i64: 1, 16, 128>}]} {
    %c0 = arith.constant 0 : index
    %c0_0 = arith.constant 0 : index
    %c0_1 = arith.constant 0 : index
    %0 = vector.load %arg2[%c0, %c0_0, %c0_1] : memref<1x32x16xf32, #tpu.memory_space<vmem>>, vector<1x32x16xf32>
    %1 = vector.shape_cast %0 : vector<1x32x16xf32> to vector<32x16xf32>
    %2 = arith.truncf %1 : vector<32x16xf32> to vector<32x16xbf16>
    %c0_2 = arith.constant 0 : index
    %c0_3 = arith.constant 0 : index
    %3 = vector.load %arg3[%c0_2, %c0_3] : memref<32x128xbf16, #tpu.memory_space<vmem>>, vector<32x128xbf16>
    %cst = arith.constant dense<0.000000e+00> : vector<16x128xf32>
    %4 = tpu.matmul %2, %3, %cst {dimension_numbers = #tpu.dot_dimension_numbers<[0], [0], [1], [1], [0, 1, 1, 1], [], []>} : vector<32x16xbf16>, vector<32x128xbf16>, vector<16x128xf32> -> vector<16x128xf32>
    %c0_4 = arith.constant 0 : index
    %c0_5 = arith.constant 0 : index
    %5 = vector.load %arg4[%c0_4, %c0_5] : memref<1x128xf32, #tpu.memory_space<vmem>>, vector<1x128xf32>
    %6 = vector.broadcast %5 : vector<1x128xf32> to vector<16x128xf32>
    %7 = arith.addf %4, %6 : vector<16x128xf32>
    %cst_6 = arith.constant dense<0xFF800000> : vector<16xf32>
    %8 = vector.multi_reduction <maximumf>, %7, %cst_6 [1] : vector<16x128xf32> to vector<16xf32>
    %9 = vector.shape_cast %8 : vector<16xf32> to vector<16x1xf32>
    %10 = vector.broadcast %9 : vector<16x1xf32> to vector<16x128xf32>
    %11 = arith.subf %7, %10 : vector<16x128xf32>
    %12 = math.exp %11 : vector<16x128xf32>
    %cst_7 = arith.constant dense<0.000000e+00> : vector<16xf32>
    %13 = vector.multi_reduction <add>, %12, %cst_7 [1] : vector<16x128xf32> to vector<16xf32>
    %14 = vector.shape_cast %13 : vector<16xf32> to vector<16x1xf32>
    %15 = math.log %14 : vector<16x1xf32>
    %16 = vector.broadcast %15 : vector<16x1xf32> to vector<16x128xf32>
    %17 = arith.subf %11, %16 : vector<16x128xf32>
    %c0_8 = arith.constant 0 : index
    %c0_9 = arith.constant 0 : index
    %c0_10 = arith.constant 0 : index
    %18 = vector.load %arg5[%c0_8, %c0_9, %c0_10] : memref<1x16x128xf32, #tpu.memory_space<vmem>>, vector<1x16x128xf32>
    %19 = vector.shape_cast %18 : vector<1x16x128xf32> to vector<16x128xf32>
    %20 = vector.shape_cast %17 : vector<16x128xf32> to vector<1x16x128xf32>
    tpu.vector_store %arg5[%c0_8, %c0_9, %c0_10], %20 {strides = array<i32>} : memref<1x16x128xf32, #tpu.memory_space<vmem>>, vector<1x16x128xf32>,
    return
  }
  func.func @transform_0(%arg0: i32, %arg1: i32) -> (i32, i32, i32) {
    %c0_i32 = arith.constant 0 : i32
    %c0_i32_0 = arith.constant 0 : i32
    return %arg0, %c0_i32, %arg1 : i32, i32, i32
  }
  func.func @transform_1(%arg0: i32, %arg1: i32) -> (i32, i32) {
    %c0_i32 = arith.constant 0 : i32
    %c0_i32_0 = arith.constant 0 : i32
    %c0_i32_1 = arith.constant 0 : i32
    return %c0_i32, %c0_i32_0 : i32, i32
  }
  func.func @transform_2(%arg0: i32, %arg1: i32) -> (i32, i32) {
    %c0_i32 = arith.constant 0 : i32
    %c0_i32_0 = arith.constant 0 : i32
    %c0_i32_1 = arith.constant 0 : i32
    return %c0_i32, %c0_i32_0 : i32, i32
  }
  func.func @transform_3(%arg0: i32, %arg1: i32) -> (i32, i32, i32) {
    %c0_i32 = arith.constant 0 : i32
    %c0_i32_0 = arith.constant 0 : i32
    return %arg0, %c0_i32, %arg1 : i32, i32, i32
  }
}

</mosaic_0001>

<llo_original>
// kernel: conv_asr_decoder.1
$region0: #{conv_asr_decoder.1}
  #allocation0 [shape = 'u32[]', space=smem, size = 0x4, offset = 0x4, fixed_abs, tag = 'smem constant byte address 0x4 - core index']
  #allocation1 [shape = 'u32[144,128]{1,0:T(1,128)}', space=vmem, size = 0x12000, scoped, tag = 'internal scratch']
  %s0 = inlined_call_operand.hbm [shape: f32[2,32,16], index: 0, kind: input, shape index: {}]
  %s1 = inlined_call_operand.hbm [shape: bf16[32,128], index: 1, kind: input, shape index: {}]
  %s2 = inlined_call_operand.hbm [shape: f32[1,128], index: 2, kind: input, shape index: {}]
  %s3 = inlined_call_operand.hbm [shape: f32[2,16,128], index: 3, kind: output, shape index: {}]
  %s4 = sld [smem:[#allocation0]]
  $region57: #{conv_asr_decoder.1} parent=0
    _
  %s6 = ssub.s32 1, %s4
  %s7 = scalar_select 0, %s6, %s4
  $region1: #{conv_asr_decoder.1} parent=0
    #allocation2 [shape = 'u8[32768]{0}', space=vmem, size = 0x8000, scoped, tag = 'input window, operand 0']
    #allocation3 [shape = 's32[2]{0}', space=sflag, size = 0x8, scoped, tag = 'scoped memory for conv_asr_decoder.1']
    #allocation4 [shape = 's32[2]{0}', space=sflag, size = 0x8, scoped, tag = 'scoped memory for conv_asr_decoder.1']
    #allocation5 [shape = 'u8[8192]{0}', space=vmem, size = 0x2000, scoped, tag = 'input window, operand 1, single buffered']
    #allocation6 [shape = 's32[1]{0}', space=sflag, size = 0x4, scoped, tag = 'scoped memory for conv_asr_decoder.1']
    #allocation7 [shape = 'u8[512]{0}', space=vmem, size = 0x400, scoped, tag = 'input window, operand 2, single buffered']
    #allocation8 [shape = 'u8[16384]{0}', space=vmem, size = 0x4000, scoped, tag = 'output window, operand 0']
    %8 = vsyncpa [#allocation3], 0
    %s9 = scalar_lea.sflag [#allocation3], 1
    %10 = vsyncpa %s9, 0
    %11 = vsyncpa [#allocation6], 0
    %12 = vsyncpa [#allocation4], 0
    %s13 = scalar_lea.sflag [#allocation4], 1
    %14 = vsyncpa %s13, 0
    loop: start=0, step=1, limit=4
    $region2: #{conv_asr_decoder.1} parent=1 // loop_pre_header
      _
    $region3: #{conv_asr_decoder.1} parent=1 // loop_header
      %s16 = sphi 0, %s20
      %p17 = scmp.ge.s32.totalorder %s16, 4
      %s23 = sphi 0, %s35
      %s24 = sphi 0, %s31
      %s25 = sphi 0, %s23
      %s26 = sphi 0, %s24
      %s27 = sphi 0, %s25
      %s28 = sphi 0, %s26
      %s40 = sphi 0, %s42
      %s43 = sphi 0, %s40
      %s44 = sphi 0, %s43
      %s60 = sphi 0, %s44
      %s64 = sphi 0, %s64
      %s66 = sphi 0, %s64
      %s67 = sphi 0, %s66
      %s81 = sphi 0, %s67
      %s85 = sphi 0, %s85
      %s87 = sphi 0, %s85
      %s88 = sphi 0, %s87
      %s102 = sphi 0, %s88
      %s110 = sphi 0, %s112
      %s113 = sphi 0, %s110
      %s114 = sphi 0, %s113
      %s130 = sphi 0, %s114
    $region4: #{conv_asr_decoder.1} parent=1 // loop_header_branch
      %19 = sbr.rel (%p17) target = $region8
    $region5: #{conv_asr_decoder.1} parent=1 // loop_body
      %s21 = ssub.s32 %s16, 1
      %s22 = ssub.s32 %s16, 2
      %s29 = sadd.s32 1, %s24
      %p30 = scmp.ge.s32.totalorder %s29, 1
      %s31 = scalar_select %p30, 0, %s29
      %s32 = sadd.s32 1, %s23
      %s33 = scalar_select %p30, %s32, %s23
      %p34 = scmp.ge.s32.totalorder %s33, 2
      %s35 = scalar_select %p34, 0, %s33
      %s36 = ssub.s32 %s23, %s35
      %s37 = ssub.s32 %s24, %s31
      %s38 = sor.u32 %s36, %s37
      %p39 = scmp.eq.s32.totalorder %s38, 0
      %s41 = sadd.s32 %s40, 1
      %s42 = scalar_select %p39, %s40, %s41
      %p45 = pneg %p39
      %p46 = scmp.eq.s32.totalorder %s16, 1
      %p47 = por %p45, %p46
      %p48 = scmp.ne.s32.totalorder %s40, %s43
      %p49 = scmp.eq.s32.totalorder %s16, 0
      %p50 = por %p48, %p49
      %p51 = scmp.ne.s32.totalorder %s40, %s43
      %p52 = scmp.eq.s32.totalorder %s21, 1
      %p53 = por %p51, %p52
      %p54 = scmp.ne.s32.totalorder %s43, %s44
      %p55 = scmp.eq.s32.totalorder %s21, 0
      %p56 = por %p54, %p55
      %p57 = scmp.ne.s32.totalorder %s43, %s44
      %p58 = scmp.eq.s32.totalorder %s22, 1
      %p59 = por %p57, %p58
      %p61 = scmp.ne.s32.totalorder %s44, %s60
      %p62 = scmp.eq.s32.totalorder %s22, 0
      %p63 = por %p61, %p62
      %s65 = sadd.s32 %s64, 1
      %p68 = scmp.eq.s32.totalorder %s16, 1
      %p69 = scmp.ne.s32.totalorder %s64, %s66
      %p70 = scmp.eq.s32.totalorder %s16, 0
      %p71 = por %p69, %p70
      %p72 = scmp.ne.s32.totalorder %s64, %s66
      %p73 = scmp.eq.s32.totalorder %s21, 1
      %p74 = por %p72, %p73
      %p75 = scmp.ne.s32.totalorder %s66, %s67
      %p76 = scmp.eq.s32.totalorder %s21, 0
      %p77 = por %p75, %p76
      %p78 = scmp.ne.s32.totalorder %s66, %s67
      %p79 = scmp.eq.s32.totalorder %s22, 1
      %p80 = por %p78, %p79
      %p82 = scmp.ne.s32.totalorder %s67, %s81
      %p83 = scmp.eq.s32.totalorder %s22, 0
      %p84 = por %p82, %p83
      %s86 = sadd.s32 %s85, 1
      %p89 = scmp.eq.s32.totalorder %s16, 1
      %p90 = scmp.ne.s32.totalorder %s85, %s87
      %p91 = scmp.eq.s32.totalorder %s16, 0
      %p92 = por %p90, %p91
      %p93 = scmp.ne.s32.totalorder %s85, %s87
      %p94 = scmp.eq.s32.totalorder %s21, 1
      %p95 = por %p93, %p94
      %p96 = scmp.ne.s32.totalorder %s87, %s88
      %p97 = scmp.eq.s32.totalorder %s21, 0
      %p98 = por %p96, %p97
      %p99 = scmp.ne.s32.totalorder %s87, %s88
      %p100 = scmp.eq.s32.totalorder %s22, 1
      %p101 = por %p99, %p100
      %p103 = scmp.ne.s32.totalorder %s88, %s102
      %p104 = scmp.eq.s32.totalorder %s22, 0
      %p105 = por %p103, %p104
      %s106 = ssub.s32 %s23, %s35
      %s107 = ssub.s32 %s24, %s31
      %s108 = sor.u32 %s106, %s107
      %p109 = scmp.eq.s32.totalorder %s108, 0
      %s111 = sadd.s32 %s110, 1
      %s112 = scalar_select %p109, %s110, %s111
      %p115 = pneg %p109
      %p116 = scmp.eq.s32.totalorder %s16, 1
      %p117 = por %p115, %p116
      %p118 = scmp.ne.s32.totalorder %s110, %s113
      %p119 = scmp.eq.s32.totalorder %s16, 0
      %p120 = por %p118, %p119
      %p121 = scmp.ne.s32.totalorder %s110, %s113
      %p122 = scmp.eq.s32.totalorder %s21, 1
      %p123 = por %p121, %p122
      %p124 = scmp.ne.s32.totalorder %s113, %s114
      %p125 = scmp.eq.s32.totalorder %s21, 0
      %p126 = por %p124, %p125
      %p127 = scmp.ne.s32.totalorder %s113, %s114
      %p128 = scmp.eq.s32.totalorder %s22, 1
      %p129 = por %p127, %p128
      %p131 = scmp.ne.s32.totalorder %s114, %s130
      %p132 = scmp.eq.s32.totalorder %s22, 0
      %p133 = por %p131, %p132
      %p134 = scmp.le.s32.totalorder 1, %s16
      %p135 = scmp.lt.s32.totalorder %s16, 3
      %p136 = pnand %p134, %p135
      %p137 = pneg %p136
      // Predicated region
      $region9: #{conv_asr_decoder.1} parent=5 // pred_check
        _
      $region10: #{conv_asr_decoder.1} parent=5 // pred_check_branch
        %139 = sbr.rel (%p136) target = $region12
      $region11: #{conv_asr_decoder.1} parent=5 // pred_region
        %s140 = ssub.s32 %s16, 1
        // Predicated region
        $region13: #{conv_asr_decoder.1} parent=11 // pred_check
          %p141 = pneg %p77
        $region14: #{conv_asr_decoder.1} parent=11 // pred_check_branch
          %143 = sbr.rel (%p141) target = $region16
        $region15: #{conv_asr_decoder.1} parent=11 // pred_region
          %s145 = ssub.s32 256, 256
          %146 = vsyncadd [#allocation6], %s145
          %s147 = sshll.u32 [#allocation5], 4
          %s148 = int_to_ptr.vmem [resolvable:$true] %s147
          %153 = dma.hbm_to_vmem [thread:$0]  %s1, 256, %s148, [#allocation6], 64, 64, 4
        $region16: #{conv_asr_decoder.1} parent=11 // pred_fallthru
          _
        // Predicated region
        $region17: #{conv_asr_decoder.1} parent=11 // pred_check
          %p154 = pneg %p98
        $region18: #{conv_asr_decoder.1} parent=11 // pred_check_branch
          %156 = sbr.rel (%p154) target = $region20
        $region19: #{conv_asr_decoder.1} parent=11 // pred_region
          %s158 = ssub.s32 16, 16
          %159 = vsyncadd [#allocation6], %s158
          %s161 = sshll.u32 [#allocation7], 4
          %s162 = int_to_ptr.vmem [resolvable:$true] %s161
          %164 = dma.hbm_to_vmem [thread:$0]  %s2, 16, %s162, [#allocation6]
        $region20: #{conv_asr_decoder.1} parent=11 // pred_fallthru
          _
      $region12: #{conv_asr_decoder.1} parent=5 // pred_fallthru
        _
      %p165 = scmp.lt.s32.totalorder %s16, 2
      // Predicated region
      $region21: #{conv_asr_decoder.1} parent=5 // pred_check
        %p166 = pneg %p165
      $region22: #{conv_asr_decoder.1} parent=5 // pred_check_branch
        %168 = sbr.rel (%p166) target = $region24
      $region23: #{conv_asr_decoder.1} parent=5 // pred_region
        // Predicated region
        $region25: #{conv_asr_decoder.1} parent=23 // pred_check
          %p169 = pneg %p50
        $region26: #{conv_asr_decoder.1} parent=23 // pred_check_branch
          %171 = sbr.rel (%p169) target = $region28
        $region27: #{conv_asr_decoder.1} parent=23 // pred_region
          %s172 = sand.u32 %s40, 1
          %s173 = scalar_lea.sflag [#allocation3], %s172
          %s174 = sand.u32 %s40, 1
          %s175 = smul.addr %s174, 32
          %s176 = scalar_lea.vmem [#allocation2], %s175
          %s178 = ssub.s32 512, 512
          %179 = vsyncadd %s173, %s178
          %s180 = smul.addr %s23, 4
          %s181 = sadd.s32 %s24, %s180
          %s182 = smul.addr %s181, 128
          %s183 = scalar_lea.hbm %s0, %s182
          %s184 = sshll.u32 %s176, 4
          %s185 = int_to_ptr.vmem [resolvable:$true] %s184
          %190 = dma.hbm_to_vmem [thread:$0]  %s183, 512, %s185, %s173, 128, 128, 8
        $region28: #{conv_asr_decoder.1} parent=23 // pred_fallthru
          _
      $region24: #{conv_asr_decoder.1} parent=5 // pred_fallthru
        _
      %p191 = scmp.le.s32.totalorder 1, %s16
      %p192 = scmp.lt.s32.totalorder %s16, 3
      %p193 = pnand %p191, %p192
      %p194 = pneg %p193
      // Predicated region
      $region29: #{conv_asr_decoder.1} parent=5 // pred_check
        _
      $region30: #{conv_asr_decoder.1} parent=5 // pred_check_branch
        %196 = sbr.rel (%p193) target = $region32
      $region31: #{conv_asr_decoder.1} parent=5 // pred_region
        %s197 = ssub.s32 %s16, 1
        %s198 = sand.u32 %s43, 1
        %s199 = scalar_lea.sflag [#allocation3], %s198
        %s200 = sand.u32 %s43, 1
        %s201 = smul.addr %s200, 32
        %s202 = scalar_lea.vmem [#allocation2], %s201
        // Predicated region
        $region33: #{conv_asr_decoder.1} parent=31 // pred_check
          %p203 = pneg %p56
        $region34: #{conv_asr_decoder.1} parent=31 // pred_check_branch
          %205 = sbr.rel (%p203) target = $region36
        $region35: #{conv_asr_decoder.1} parent=31 // pred_region
          %206 = dma.done %s199, 512
        $region36: #{conv_asr_decoder.1} parent=31 // pred_fallthru
          _
        // Predicated region
        $region37: #{conv_asr_decoder.1} parent=31 // pred_check
          %p207 = pneg %p77
        $region38: #{conv_asr_decoder.1} parent=31 // pred_check_branch
          %209 = sbr.rel (%p207) target = $region40
        $region39: #{conv_asr_decoder.1} parent=31 // pred_region
          %210 = dma.done [#allocation6], 256
        $region40: #{conv_asr_decoder.1} parent=31 // pred_fallthru
          _
        // Predicated region
        $region41: #{conv_asr_decoder.1} parent=31 // pred_check
          %p211 = pneg %p98
        $region42: #{conv_asr_decoder.1} parent=31 // pred_check_branch
          %213 = sbr.rel (%p211) target = $region44
        $region43: #{conv_asr_decoder.1} parent=31 // pred_region
          %214 = dma.done [#allocation6], 16
        $region44: #{conv_asr_decoder.1} parent=31 // pred_fallthru
          _
        %s215 = sand.u32 %s43, 1
        %s216 = scalar_lea.sflag [#allocation3], %s215
        %s217 = sand.u32 %s43, 1
        %s218 = smul.addr %s217, 32
        %s219 = scalar_lea.vmem [#allocation2], %s218
        %p220 = pneg %p56
        %p221 = pneg %p53
        %p222 = pneg %p77
        %p223 = pneg %p74
        %p224 = pneg %p98
        %p225 = pneg %p95
        %p226 = pneg %p126
        %p227 = pneg %p123
        %s228 = sand.u32 %s113, 1
        %s229 = scalar_lea.sflag [#allocation4], %s228
        %s230 = sand.u32 %s113, 1
        %s231 = smul.addr %s230, 16
        %s232 = scalar_lea.vmem [#allocation8], %s231
        %v234 = vld [vmem:[%s202] sm:$0xff]
        %v235 = vld [vmem:[%s202 + $0x8] sm:$0xff]
        %v236 = vld [vmem:[%s202 + $0x10] sm:$0xff]
        %v237 = vld [vmem:[%s202 + $0x18] sm:$0xff]
        %v238 = vpack.c.bf16 %v235, %v234
        %v239 = vpack.c.bf16 %v237, %v236
        %v240 = vld [vmem:[#allocation5] sm:$0xf]
        %v241 = vld [vmem:[#allocation5 + $0x4] sm:$0xf]
        %v242 = vld [vmem:[#allocation5 + $0x8] sm:$0xf]
        %v243 = vld [vmem:[#allocation5 + $0xc] sm:$0xf]
        %v244 = vld [vmem:[#allocation7] sm:$0x1]
        %v246 = vlaneseq
        %v247 = vshrl.u32 %v246, 7
        %v248 = vsub.s32 0, %v247
        %v249 = vrot.slane %v244, %v248
        %251 = vxpose.xlu0.c.b16.start [1/8] %v238, 128
        %252 = vxpose.xlu0.c.b16.cont [2/8] %v239, 128
        %253 = vxpose.xlu0.c.b16.cont [3/8] 0, 128
        %254 = vxpose.xlu0.c.b16.cont [4/8] 0, 128
        %255 = vxpose.xlu0.c.b16.cont [5/8] 0, 128
        %256 = vxpose.xlu0.c.b16.cont [6/8] 0, 128
        %257 = vxpose.xlu0.c.b16.cont [7/8] 0, 128
        %258 = vxpose.xlu0.c.b16.end [8/8] 0, 128
        %v259 = vpop.trf.xlu0
        %v260 = vpop.trf.xlu0
        %v261 = vpop.trf.xlu0
        %v262 = vpop.trf.xlu0
        %v263 = vpop.trf.xlu0
        %v264 = vpop.trf.xlu0
        %v265 = vpop.trf.xlu0
        %v266 = vpop.trf.xlu0
        %v271 = vunpack.c.l.b16 %v240
        %v272 = vunpack.c.l.b16 %v241
        %v273 = vunpack.c.l.b16 %v242
        %v274 = vunpack.c.l.b16 %v243
        %v275 = vpack.c.b16 %v272, %v271
        %v276 = vpack.c.b16 %v274, %v273
        %vm279 = vcmask 261120
        %v281 = vsel %vm279, %v259, 0
        %283 = vmatprep.subr.bf16.mxu0 0
        %284 = vmatpush1.bf16.msra.mxu0 %v275
        %285 = vmatprep.subr.bf16.mxu0 0
        %286 = vmatpush1.bf16.msra.mxu0 %v276
        %287 = vmatprep.subr.bf16.mxu0 0
        %288 = vmatpush1.bf16.msra.mxu0 0
        %289 = vmatprep.subr.bf16.mxu0 0
        %290 = vmatpush1.bf16.msra.mxu0 0
        %291 = vmatprep.subr.bf16.mxu0 0
        %292 = vmatpush1.bf16.msra.mxu0 0
        %293 = vmatprep.subr.bf16.mxu0 0
        %294 = vmatpush1.bf16.msra.mxu0 0
        %295 = vmatprep.subr.bf16.mxu0 0
        %296 = vmatpush1.bf16.msra.mxu0 0
        %297 = vmatprep.subr.bf16.mxu0 0
        %298 = vmatpush1.bf16.msra.mxu0 0
        %299 = vmatprep.subr.bf16.mxu0 0
        %300 = vmatpush1.bf16.msra.mxu0 0
        %301 = vmatprep.subr.bf16.mxu0 0
        %302 = vmatpush1.bf16.msra.mxu0 0
        %303 = vmatprep.subr.bf16.mxu0 0
        %304 = vmatpush1.bf16.msra.mxu0 0
        %305 = vmatprep.subr.bf16.mxu0 0
        %306 = vmatpush1.bf16.msra.mxu0 0
        %307 = vmatprep.subr.bf16.mxu0 0
        %308 = vmatpush1.bf16.msra.mxu0 0
        %309 = vmatprep.subr.bf16.mxu0 0
        %310 = vmatpush1.bf16.msra.mxu0 0
        %311 = vmatprep.subr.bf16.mxu0 0
        %312 = vmatpush1.bf16.msra.mxu0 0
        %313 = vmatprep.subr.bf16.mxu0 0
        %314 = vmatpush1.bf16.msra.mxu0 0
        %315 = vmatprep.mubr.bf16.mxu0 0
        %316 = vmatmul.mubr.bf16.gmra.mrb[0].mxu0 %v281
        %v317 = vpop.f32.mrb[0].mxu0
        %v318 = vadd.f32 %v249, %v317
        %v319 = vpop.f32.mrb[0].mxu0
        %v320 = vpop.f32.mrb[0].mxu0
        %v321 = vadd.f32 %v249, %v320
        %v322 = vpop.f32.mrb[0].mxu0
        %323 = vdwg.mxu0
        %324 = vmax.xlane.f32.xlu0 %v318
        %v325 = vpop.xlane.xlu0 %324
        %326 = vmax.xlane.f32.xlu0 %v321
        %v327 = vpop.xlane.xlu0 %326
        %v328 = vsub.f32 %v318, %v325
        %v329 = vsub.f32 %v321, %v327
        %v330 = vmul.f32 %v328, 1.442695
        %v331 = vpow.pop %v330
        %v332 = vmul.f32 %v329, 1.442695
        %v333 = vpow.pop %v332
        %334 = vadd.xlane.f32.xlu0 %v331
        %v335 = vpop.xlane.xlu0 %334
        %336 = vadd.xlane.f32.xlu0 %v333
        %v337 = vpop.xlane.xlu0 %336
        %v338 = vlog2.pop %v335
        %v339 = vmul.f32 %v338, 0.6931472
        %v340 = vlog2.pop %v337
        %v341 = vmul.f32 %v340, 0.6931472
        %v342 = vsub.f32 %v328, %v339
        %v343 = vsub.f32 %v329, %v341
        %344 = vst [vmem:[%s232] sm:$0xff] %v342
        %345 = vst [vmem:[%s232 + $0x8] sm:$0xff] %v343
        %s346 = sand.u32 %s113, 1
        %s347 = scalar_lea.sflag [#allocation4], %s346
        %s348 = sand.u32 %s113, 1
        %s349 = smul.addr %s348, 16
        %s350 = scalar_lea.vmem [#allocation8], %s349
        // Predicated region
        $region45: #{conv_asr_decoder.1} parent=31 // pred_check
          %p351 = pneg %p123
        $region46: #{conv_asr_decoder.1} parent=31 // pred_check_branch
          %353 = sbr.rel (%p351) target = $region48
        $region47: #{conv_asr_decoder.1} parent=31 // pred_region
          %s355 = ssub.s32 256, 256
          %356 = vsyncadd %s347, %s355
          %s357 = smul.addr %s25, 2
          %s358 = sadd.s32 %s26, %s357
          %s359 = smul.addr %s358, 128
          %s360 = scalar_lea.hbm %s3, %s359
          %s361 = sshll.u32 %s350, 4
          %s362 = int_to_ptr.vmem [resolvable:$true] %s361
          %367 = dma.vmem_to_hbm [thread:$0]  %s362, 256, %s360, %s347, 128, 128, 8
        $region48: #{conv_asr_decoder.1} parent=31 // pred_fallthru
          _
      $region32: #{conv_asr_decoder.1} parent=5 // pred_fallthru
        _
      %p368 = scmp.le.s32.totalorder 2, %s16
      // Predicated region
      $region49: #{conv_asr_decoder.1} parent=5 // pred_check
        %p369 = pneg %p368
      $region50: #{conv_asr_decoder.1} parent=5 // pred_check_branch
        %371 = sbr.rel (%p369) target = $region52
      $region51: #{conv_asr_decoder.1} parent=5 // pred_region
        %s372 = ssub.s32 %s16, 2
        // Predicated region
        $region53: #{conv_asr_decoder.1} parent=51 // pred_check
          %p373 = pneg %p129
        $region54: #{conv_asr_decoder.1} parent=51 // pred_check_branch
          %375 = sbr.rel (%p373) target = $region56
        $region55: #{conv_asr_decoder.1} parent=51 // pred_region
          %s376 = sand.u32 %s114, 1
          %s377 = scalar_lea.sflag [#allocation4], %s376
          %s378 = sand.u32 %s114, 1
          %s379 = smul.addr %s378, 16
          %s380 = scalar_lea.vmem [#allocation8], %s379
          %381 = dma.done %s377, 256
        $region56: #{conv_asr_decoder.1} parent=51 // pred_fallthru
          _
      $region52: #{conv_asr_decoder.1} parent=5 // pred_fallthru
        _
    $region6: #{conv_asr_decoder.1} parent=1 // loop_footer
      %s20 = sadd.s32 1, %s16
    $region7: #{conv_asr_decoder.1} parent=1 // loop_footer_branch
      %15 = sbr.rel target = $region3
    $region8: #{conv_asr_decoder.1} parent=1 // loop_exit
      _
    %382 = vsyncpa [#allocation3], 1
    %s383 = scalar_lea.sflag [#allocation3], 1
    %384 = vsyncpa %s383, 1
    %385 = vsyncpa [#allocation6], 1
    %386 = vsyncpa [#allocation4], 1
    %s387 = scalar_lea.sflag [#allocation4], 1
    %388 = vsyncpa %s387, 1

</llo_original>
